<compile_context>
chip_gen: v5e
topology: v5e:2x2
jax: 0.10.0
libtpu: 0.0.40
codegen_flags: <defaults>
</compile_context>

<pallas_src>
import jax
import jax.numpy as jnp
from jax.experimental import pallas as pl
from jax.experimental.pallas import tpu as pltpu

N_NEURONS = 64
_TB_MAX = 8192  # batch-tile (lane) width once the batch exceeds it

# v6e / v7x VPU+EUP are bf16-native -> run the elementwise SiLU chain in bf16
# there; v5e has no bf16 VPU/EUP, so keep the elementwise math in f32 on it.
try:
    _DEVICE_KIND = jax.devices()[0].device_kind.lower()
except Exception:  # pragma: no cover - fall back to the safe f32 path
    _DEVICE_KIND = ""
_SILU_DTYPE = (jnp.bfloat16
               if any(t in _DEVICE_KIND for t in ("v6", "v7", "7x"))
               else jnp.float32)


def _silu(z):
    # SiLU(z) = z*sigmoid(z) = 0.5*z*(1 + tanh(0.5*z)) -- a single EUP
    # transcendental per element instead of exp + reciprocal.
    return 0.5 * z * (1.0 + jnp.tanh(0.5 * z))


def _mlp_kernel(in_ref,
                w1_ref, b1_ref,
                w2_ref, b2_ref,
                w3_ref, b3_ref,
                w4_ref, b4_ref,
                wo_ref, bo_ref,
                o_ref):
    # Feature-major: activations are [features, TB]; batch is on the lane axis.
    inp = in_ref[...]                      # [3, TB] f32 (packed x / alpha / x_co)
    w1 = w1_ref[...]                       # [64, 3] f32

    # Layer 1 (K = 3): three broadcast FMAs on the VPU beat a K=3 MXU matmul.
    z = (w1[:, 0:1] * inp[0:1, :]
         + w1[:, 1:2] * inp[1:2, :]
         + w1[:, 2:3] * inp[2:3, :]) + b1_ref[...]
    h = _silu(z.astype(_SILU_DTYPE))       # [64, TB]

    # Hidden layers on the MXU: bf16 operands, f32 accumulation; bias add in f32,
    # SiLU chain in _SILU_DTYPE (bf16 on v6e/v7x, f32 on v5e).
    for w_ref, b_ref in ((w2_ref, b2_ref), (w3_ref, b3_ref), (w4_ref, b4_ref)):
        z = jnp.dot(w_ref[...], h.astype(jnp.bfloat16),
                    preferred_element_type=jnp.float32) + b_ref[...]
        h = _silu(z.astype(_SILU_DTYPE))   # [64, TB]

    # Output layer (out_dim == 1): multiply + sublane (feature) reduce gives a
    # lane-dense [1, TB] result directly (no [TB, 1] masked stores, no transpose).
    # Padded lanes of a partial last tile carry garbage, which is safe: the only
    # reduction is over features (sublanes) and the output store is masked.
    o = jnp.sum(h.astype(jnp.float32) * wo_ref[...], axis=0, keepdims=True)
    o_ref[...] = (o + bo_ref[...]).astype(o_ref.dtype)


@jax.jit
def nn_cond_forward(x, alpha, x_co, params):
    """Forward pass of NN_cond.  x, alpha, x_co: [B, 1] float32 -> [B, 1]."""
    (w1, b1, w2, b2, w3, b3, w4, b4, wo, bo) = params
    batch = x.shape[0]
    in_dim = w1.shape[1]
    # TODO(synk): assumes x / alpha / x_co carry one feature each (input_dim=3,
    # the module default); wider inputs would need the concatenated path.

    # Pack the three [B,1] inputs into one feature-major [3, B] array: a single
    # lane-dense block per grid step instead of three tiny 1-sublane DMAs.
    inp = jnp.concatenate(
        [x.astype(jnp.float32).reshape(1, batch),
         alpha.astype(jnp.float32).reshape(1, batch),
         x_co.astype(jnp.float32).reshape(1, batch)], axis=0)

    # Hidden-layer weights hit the MXU as bf16; cast once here, outside the kernel.
    w2b, w3b, w4b = (w.astype(jnp.bfloat16) for w in (w2, w3, w4))

    tb = batch if batch <= _TB_MAX else _TB_MAX
    grid = (pl.cdiv(batch, tb),)

    act_spec = pl.BlockSpec((in_dim, tb), lambda i: (0, i))          # batch-tiled
    res_spec = lambda shape: pl.BlockSpec(shape, lambda i: (0, 0))   # VMEM-resident

    weight_args = (w1, b1, w2b, b2, w3b, b3, w4b, b4, wo, bo)
    param_bytes = sum(int(p.size) * p.dtype.itemsize for p in weight_args)
    flops = 2 * batch * (in_dim * N_NEURONS + 3 * N_NEURONS * N_NEURONS + N_NEURONS)

    out = pl.pallas_call(
        _mlp_kernel,
        out_shape=jax.ShapeDtypeStruct((1, batch), jnp.float32),
        grid=grid,
        in_specs=[
            act_spec,                                    # packed [3, B] input
            res_spec((N_NEURONS, in_dim)),               # w1  [64, 3]
            res_spec((N_NEURONS, 1)),                    # b1  [64, 1]
            res_spec((N_NEURONS, N_NEURONS)),            # w2  (bf16)
            res_spec((N_NEURONS, 1)),                    # b2
            res_spec((N_NEURONS, N_NEURONS)),            # w3  (bf16)
            res_spec((N_NEURONS, 1)),                    # b3
            res_spec((N_NEURONS, N_NEURONS)),            # w4  (bf16)
            res_spec((N_NEURONS, 1)),                    # b4
            res_spec((N_NEURONS, 1)),                    # wo  [64, 1]
            res_spec((1, 1)),                            # bo  [1, 1]
        ],
        out_specs=pl.BlockSpec((1, tb), lambda i: (0, i)),
        compiler_params=pltpu.CompilerParams(
            dimension_semantics=("parallel",),           # shard batch tiles over TCs (v7x)
            vmem_limit_bytes=32 * 1024 * 1024,
        ),
        cost_estimate=pl.CostEstimate(
            flops=flops,
            transcendentals=4 * N_NEURONS * batch,       # one tanh per neuron per layer
            bytes_accessed=batch * (in_dim + 1) * 4 + param_bytes,
        ),
    )(inp, w1, b1, w2b, b2, w3b, b3, w4b, b4, wo, bo)

    return out.reshape(batch, 1)


def init_params(key, input_dim=3, output_dim=1):
    """torch.nn.Linear default init U(-k, k), k = 1/sqrt(fan_in).
    w1..w4 are stored torch-style [out_features, in_features]; the output weight
    is stored [in_features, output_dim] = [64, 1] for the kernel's reduce."""
    shapes = [
        (N_NEURONS, input_dim),
        (N_NEURONS, N_NEURONS),
        (N_NEURONS, N_NEURONS),
        (N_NEURONS, N_NEURONS),
        (output_dim, N_NEURONS),
    ]
    params = []
    for (fan_out, fan_in) in shapes:
        key, kw, kb = jax.random.split(key, 3)
        bound = 1.0 / (fan_in ** 0.5)
        w = jax.random.uniform(kw, (fan_out, fan_in), jnp.float32, -bound, bound)
        b = jax.random.uniform(kb, (fan_out, 1), jnp.float32, -bound, bound)
        params += [w, b]
    w1, b1, w2, b2, w3, b3, w4, b4, wo, bo = params
    return (w1, b1, w2, b2, w3, b3, w4, b4, wo.T, bo)      # wo -> [64, 1]


def reference_forward(x, alpha, x_co, params):
    """Pure-f32 JAX reference matching the PyTorch module semantics."""
    (w1, b1, w2, b2, w3, b3, w4, b4, wo, bo) = params
    res = jnp.concatenate([x, alpha, x_co], axis=1)        # [B, 3]
    h = jax.nn.silu(res @ w1.T + b1.T)
    h = jax.nn.silu(h @ w2.T + b2.T)
    h = jax.nn.silu(h @ w3.T + b3.T)
    h = jax.nn.silu(h @ w4.T + b4.T)
    return h @ wo + bo                                      # [B, 1]


if __name__ == "__main__":
    key = jax.random.PRNGKey(0)
    kp, kdata = jax.random.split(key)
    params = init_params(kp, input_dim=3, output_dim=1)

    # batch=8: small-shape sanity; batch=5000: non-(8,128)-aligned batch extent.
    for batch in (8, 5000):
        kx, ka, kc = jax.random.split(jax.random.fold_in(kdata, batch), 3)
        x = jax.random.normal(kx, (batch, 1), jnp.float32)
        alpha = jax.random.normal(ka, (batch, 1), jnp.float32)
        x_co = jax.random.normal(kc, (batch, 1), jnp.float32)

        out = jax.block_until_ready(nn_cond_forward(x, alpha, x_co, params))
        ref = reference_forward(x, alpha, x_co, params)

        assert out.shape == (batch, 1), out.shape
        # Kernel uses bf16 MXU operands (and a bf16 SiLU chain on v6e/v7x) with
        # f32 accumulation; compare to a pure-f32 reference with relaxed tolerance.
        max_err = float(jnp.max(jnp.abs(out - ref)))
        assert jnp.allclose(out, ref, atol=2e-2, rtol=2e-2), (batch, max_err)

    print("KERNEL_OK")
</pallas_src>

<mosaic_0001>
module attributes {stable_mosaic.version = 11 : i64} {
  func.func @_mlp_kernel(%arg0: i32, %arg1: memref<3x8xf32, #tpu.memory_space<vmem>>, %arg2: memref<64x3xf32, #tpu.memory_space<vmem>>, %arg3: memref<64x1xf32, #tpu.memory_space<vmem>>, %arg4: memref<64x64xbf16, #tpu.memory_space<vmem>>, %arg5: memref<64x1xf32, #tpu.memory_space<vmem>>, %arg6: memref<64x64xbf16, #tpu.memory_space<vmem>>, %arg7: memref<64x1xf32, #tpu.memory_space<vmem>>, %arg8: memref<64x64xbf16, #tpu.memory_space<vmem>>, %arg9: memref<64x1xf32, #tpu.memory_space<vmem>>, %arg10: memref<64x1xf32, #tpu.memory_space<vmem>>, %arg11: memref<1x1xf32, #tpu.memory_space<vmem>>, %arg12: memref<1x8xf32, #tpu.memory_space<vmem>>) attributes {dimension_semantics = [#tpu.dimension_semantics<parallel>], iteration_bounds = array<i64: 1>, scalar_prefetch = 0 : i64, scratch_operands = 0 : i64, tpu.core_type = #tpu.core_type<tc>, window_params = [{transform_indices = @transform_0, window_bounds = array<i64: 3, 8>}, {pipeline_mode = #tpu.pipeline_mode<synchronous>, transform_indices = @transform_1, window_bounds = array<i64: 64, 3>}, {pipeline_mode = #tpu.pipeline_mode<synchronous>, transform_indices = @transform_2, window_bounds = array<i64: 64, 1>}, {pipeline_mode = #tpu.pipeline_mode<synchronous>, transform_indices = @transform_3, window_bounds = array<i64: 64, 64>}, {pipeline_mode = #tpu.pipeline_mode<synchronous>, transform_indices = @transform_4, window_bounds = array<i64: 64, 1>}, {pipeline_mode = #tpu.pipeline_mode<synchronous>, transform_indices = @transform_5, window_bounds = array<i64: 64, 64>}, {pipeline_mode = #tpu.pipeline_mode<synchronous>, transform_indices = @transform_6, window_bounds = array<i64: 64, 1>}, {pipeline_mode = #tpu.pipeline_mode<synchronous>, transform_indices = @transform_7, window_bounds = array<i64: 64, 64>}, {pipeline_mode = #tpu.pipeline_mode<synchronous>, transform_indices = @transform_8, window_bounds = array<i64: 64, 1>}, {pipeline_mode = #tpu.pipeline_mode<synchronous>, transform_indices = @transform_9, window_bounds = array<i64: 64, 1>}, {pipeline_mode = #tpu.pipeline_mode<synchronous>, transform_indices = @transform_10, window_bounds = array<i64: 1, 1>}, {transform_indices = @transform_11, window_bounds = array<i64: 1, 8>}]} {
    %c0 = arith.constant 0 : index
    %c0_0 = arith.constant 0 : index
    %0 = vector.load %arg1[%c0, %c0_0] : memref<3x8xf32, #tpu.memory_space<vmem>>, vector<3x8xf32>
    %c0_1 = arith.constant 0 : index
    %c0_2 = arith.constant 0 : index
    %1 = vector.load %arg2[%c0_1, %c0_2] : memref<64x3xf32, #tpu.memory_space<vmem>>, vector<64x3xf32>
    %2 = vector.extract_strided_slice %1 {offsets = [0, 0], sizes = [64, 1], strides = [1, 1]} : vector<64x3xf32> to vector<64x1xf32>
    %3 = vector.extract_strided_slice %0 {offsets = [0, 0], sizes = [1, 8], strides = [1, 1]} : vector<3x8xf32> to vector<1x8xf32>
    %4 = vector.broadcast %2 : vector<64x1xf32> to vector<64x8xf32>
    %5 = vector.broadcast %3 : vector<1x8xf32> to vector<64x8xf32>
    %6 = arith.mulf %4, %5 : vector<64x8xf32>
    %7 = vector.extract_strided_slice %1 {offsets = [0, 1], sizes = [64, 1], strides = [1, 1]} : vector<64x3xf32> to vector<64x1xf32>
    %8 = vector.extract_strided_slice %0 {offsets = [1, 0], sizes = [1, 8], strides = [1, 1]} : vector<3x8xf32> to vector<1x8xf32>
    %9 = vector.broadcast %7 : vector<64x1xf32> to vector<64x8xf32>
    %10 = vector.broadcast %8 : vector<1x8xf32> to vector<64x8xf32>
    %11 = arith.mulf %9, %10 : vector<64x8xf32>
    %12 = arith.addf %6, %11 : vector<64x8xf32>
    %13 = vector.extract_strided_slice %1 {offsets = [0, 2], sizes = [64, 1], strides = [1, 1]} : vector<64x3xf32> to vector<64x1xf32>
    %14 = vector.extract_strided_slice %0 {offsets = [2, 0], sizes = [1, 8], strides = [1, 1]} : vector<3x8xf32> to vector<1x8xf32>
    %15 = vector.broadcast %13 : vector<64x1xf32> to vector<64x8xf32>
    %16 = vector.broadcast %14 : vector<1x8xf32> to vector<64x8xf32>
    %17 = arith.mulf %15, %16 : vector<64x8xf32>
    %18 = arith.addf %12, %17 : vector<64x8xf32>
    %c0_3 = arith.constant 0 : index
    %c0_4 = arith.constant 0 : index
    %19 = vector.load %arg3[%c0_3, %c0_4] : memref<64x1xf32, #tpu.memory_space<vmem>>, vector<64x1xf32>
    %20 = vector.broadcast %19 : vector<64x1xf32> to vector<64x8xf32>
    %21 = arith.addf %18, %20 : vector<64x8xf32>
    %cst = arith.constant 5.000000e-01 : f32
    %22 = vector.broadcast %cst : f32 to vector<64x8xf32>
    %23 = arith.mulf %22, %21 : vector<64x8xf32>
    %cst_5 = arith.constant 5.000000e-01 : f32
    %24 = vector.broadcast %cst_5 : f32 to vector<64x8xf32>
    %25 = arith.mulf %24, %21 : vector<64x8xf32>
    %26 = math.tanh %25 : vector<64x8xf32>
    %cst_6 = arith.constant 1.000000e+00 : f32
    %27 = vector.broadcast %cst_6 : f32 to vector<64x8xf32>
    %28 = arith.addf %27, %26 : vector<64x8xf32>
    %29 = arith.mulf %23, %28 : vector<64x8xf32>
    %c0_7 = arith.constant 0 : index
    %c0_8 = arith.constant 0 : index
    %30 = vector.load %arg4[%c0_7, %c0_8] : memref<64x64xbf16, #tpu.memory_space<vmem>>, vector<64x64xbf16>
    %31 = arith.truncf %29 : vector<64x8xf32> to vector<64x8xbf16>
    %cst_9 = arith.constant dense<0.000000e+00> : vector<64x8xf32>
    %32 = tpu.matmul %30, %31, %cst_9 {dimension_numbers = #tpu.dot_dimension_numbers<[1], [0], [0], [1], [0, 0, 1, 1], [], []>} : vector<64x64xbf16>, vector<64x8xbf16>, vector<64x8xf32> -> vector<64x8xf32>
    %c0_10 = arith.constant 0 : index
    %c0_11 = arith.constant 0 : index
    %33 = vector.load %arg5[%c0_10, %c0_11] : memref<64x1xf32, #tpu.memory_space<vmem>>, vector<64x1xf32>
    %34 = vector.broadcast %33 : vector<64x1xf32> to vector<64x8xf32>
    %35 = arith.addf %32, %34 : vector<64x8xf32>
    %cst_12 = arith.constant 5.000000e-01 : f32
    %36 = vector.broadcast %cst_12 : f32 to vector<64x8xf32>
    %37 = arith.mulf %36, %35 : vector<64x8xf32>
    %cst_13 = arith.constant 5.000000e-01 : f32
    %38 = vector.broadcast %cst_13 : f32 to vector<64x8xf32>
    %39 = arith.mulf %38, %35 : vector<64x8xf32>
    %40 = math.tanh %39 : vector<64x8xf32>
    %cst_14 = arith.constant 1.000000e+00 : f32
    %41 = vector.broadcast %cst_14 : f32 to vector<64x8xf32>
    %42 = arith.addf %41, %40 : vector<64x8xf32>
    %43 = arith.mulf %37, %42 : vector<64x8xf32>
    %c0_15 = arith.constant 0 : index
    %c0_16 = arith.constant 0 : index
    %44 = vector.load %arg6[%c0_15, %c0_16] : memref<64x64xbf16, #tpu.memory_space<vmem>>, vector<64x64xbf16>
    %45 = arith.truncf %43 : vector<64x8xf32> to vector<64x8xbf16>
    %cst_17 = arith.constant dense<0.000000e+00> : vector<64x8xf32>
    %46 = tpu.matmul %44, %45, %cst_17 {dimension_numbers = #tpu.dot_dimension_numbers<[1], [0], [0], [1], [0, 0, 1, 1], [], []>} : vector<64x64xbf16>, vector<64x8xbf16>, vector<64x8xf32> -> vector<64x8xf32>
    %c0_18 = arith.constant 0 : index
    %c0_19 = arith.constant 0 : index
    %47 = vector.load %arg7[%c0_18, %c0_19] : memref<64x1xf32, #tpu.memory_space<vmem>>, vector<64x1xf32>
    %48 = vector.broadcast %47 : vector<64x1xf32> to vector<64x8xf32>
    %49 = arith.addf %46, %48 : vector<64x8xf32>
    %cst_20 = arith.constant 5.000000e-01 : f32
    %50 = vector.broadcast %cst_20 : f32 to vector<64x8xf32>
    %51 = arith.mulf %50, %49 : vector<64x8xf32>
    %cst_21 = arith.constant 5.000000e-01 : f32
    %52 = vector.broadcast %cst_21 : f32 to vector<64x8xf32>
    %53 = arith.mulf %52, %49 : vector<64x8xf32>
    %54 = math.tanh %53 : vector<64x8xf32>
    %cst_22 = arith.constant 1.000000e+00 : f32
    %55 = vector.broadcast %cst_22 : f32 to vector<64x8xf32>
    %56 = arith.addf %55, %54 : vector<64x8xf32>
    %57 = arith.mulf %51, %56 : vector<64x8xf32>
    %c0_23 = arith.constant 0 : index
    %c0_24 = arith.constant 0 : index
    %58 = vector.load %arg8[%c0_23, %c0_24] : memref<64x64xbf16, #tpu.memory_space<vmem>>, vector<64x64xbf16>
    %59 = arith.truncf %57 : vector<64x8xf32> to vector<64x8xbf16>
    %cst_25 = arith.constant dense<0.000000e+00> : vector<64x8xf32>
    %60 = tpu.matmul %58, %59, %cst_25 {dimension_numbers = #tpu.dot_dimension_numbers<[1], [0], [0], [1], [0, 0, 1, 1], [], []>} : vector<64x64xbf16>, vector<64x8xbf16>, vector<64x8xf32> -> vector<64x8xf32>
    %c0_26 = arith.constant 0 : index
    %c0_27 = arith.constant 0 : index
    %61 = vector.load %arg9[%c0_26, %c0_27] : memref<64x1xf32, #tpu.memory_space<vmem>>, vector<64x1xf32>
    %62 = vector.broadcast %61 : vector<64x1xf32> to vector<64x8xf32>
    %63 = arith.addf %60, %62 : vector<64x8xf32>
    %cst_28 = arith.constant 5.000000e-01 : f32
    %64 = vector.broadcast %cst_28 : f32 to vector<64x8xf32>
    %65 = arith.mulf %64, %63 : vector<64x8xf32>
    %cst_29 = arith.constant 5.000000e-01 : f32
    %66 = vector.broadcast %cst_29 : f32 to vector<64x8xf32>
    %67 = arith.mulf %66, %63 : vector<64x8xf32>
    %68 = math.tanh %67 : vector<64x8xf32>
    %cst_30 = arith.constant 1.000000e+00 : f32
    %69 = vector.broadcast %cst_30 : f32 to vector<64x8xf32>
    %70 = arith.addf %69, %68 : vector<64x8xf32>
    %71 = arith.mulf %65, %70 : vector<64x8xf32>
    %c0_31 = arith.constant 0 : index
    %c0_32 = arith.constant 0 : index
    %72 = vector.load %arg10[%c0_31, %c0_32] : memref<64x1xf32, #tpu.memory_space<vmem>>, vector<64x1xf32>
    %73 = vector.broadcast %72 : vector<64x1xf32> to vector<64x8xf32>
    %74 = arith.mulf %71, %73 : vector<64x8xf32>
    %cst_33 = arith.constant dense<0.000000e+00> : vector<8xf32>
    %75 = vector.multi_reduction <add>, %74, %cst_33 [0] : vector<64x8xf32> to vector<8xf32>
    %76 = vector.shape_cast %75 : vector<8xf32> to vector<1x8xf32>
    %c0_34 = arith.constant 0 : index
    %c0_35 = arith.constant 0 : index
    %77 = vector.load %arg11[%c0_34, %c0_35] : memref<1x1xf32, #tpu.memory_space<vmem>>, vector<1x1xf32>
    %78 = vector.broadcast %77 : vector<1x1xf32> to vector<1x8xf32>
    %79 = arith.addf %76, %78 : vector<1x8xf32>
    %c0_36 = arith.constant 0 : index
    %c0_37 = arith.constant 0 : index
    %80 = vector.load %arg12[%c0_36, %c0_37] : memref<1x8xf32, #tpu.memory_space<vmem>>, vector<1x8xf32>
    tpu.vector_store %arg12[%c0_36, %c0_37], %79 {strides = array<i32>} : memref<1x8xf32, #tpu.memory_space<vmem>>, vector<1x8xf32>,
    return
  }
  func.func @transform_0(%arg0: i32) -> (i32, i32) {
    %c0_i32 = arith.constant 0 : i32
    %c0_i32_0 = arith.constant 0 : i32
    return %c0_i32, %arg0 : i32, i32
  }
  func.func @transform_1(%arg0: i32) -> (i32, i32) {
    %c0_i32 = arith.constant 0 : i32
    %c0_i32_0 = arith.constant 0 : i32
    %c0_i32_1 = arith.constant 0 : i32
    return %c0_i32, %c0_i32_0 : i32, i32
  }
  func.func @transform_2(%arg0: i32) -> (i32, i32) {
    %c0_i32 = arith.constant 0 : i32
    %c0_i32_0 = arith.constant 0 : i32
    %c0_i32_1 = arith.constant 0 : i32
    return %c0_i32, %c0_i32_0 : i32, i32
  }
  func.func @transform_3(%arg0: i32) -> (i32, i32) {
    %c0_i32 = arith.constant 0 : i32
    %c0_i32_0 = arith.constant 0 : i32
    %c0_i32_1 = arith.constant 0 : i32
    return %c0_i32, %c0_i32_0 : i32, i32
  }
  func.func @transform_4(%arg0: i32) -> (i32, i32) {
    %c0_i32 = arith.constant 0 : i32
    %c0_i32_0 = arith.constant 0 : i32
    %c0_i32_1 = arith.constant 0 : i32
    return %c0_i32, %c0_i32_0 : i32, i32
  }
  func.func @transform_5(%arg0: i32) -> (i32, i32) {
    %c0_i32 = arith.constant 0 : i32
    %c0_i32_0 = arith.constant 0 : i32
    %c0_i32_1 = arith.constant 0 : i32
    return %c0_i32, %c0_i32_0 : i32, i32
  }
  func.func @transform_6(%arg0: i32) -> (i32, i32) {
    %c0_i32 = arith.constant 0 : i32
    %c0_i32_0 = arith.constant 0 : i32
    %c0_i32_1 = arith.constant 0 : i32
    return %c0_i32, %c0_i32_0 : i32, i32
  }
  func.func @transform_7(%arg0: i32) -> (i32, i32) {
    %c0_i32 = arith.constant 0 : i32
    %c0_i32_0 = arith.constant 0 : i32
    %c0_i32_1 = arith.constant 0 : i32
    return %c0_i32, %c0_i32_0 : i32, i32
  }
  func.func @transform_8(%arg0: i32) -> (i32, i32) {
    %c0_i32 = arith.constant 0 : i32
    %c0_i32_0 = arith.constant 0 : i32
    %c0_i32_1 = arith.constant 0 : i32
    return %c0_i32, %c0_i32_0 : i32, i32
  }
  func.func @transform_9(%arg0: i32) -> (i32, i32) {
    %c0_i32 = arith.constant 0 : i32
    %c0_i32_0 = arith.constant 0 : i32
    %c0_i32_1 = arith.constant 0 : i32
    return %c0_i32, %c0_i32_0 : i32, i32
  }
  func.func @transform_10(%arg0: i32) -> (i32, i32) {
    %c0_i32 = arith.constant 0 : i32
    %c0_i32_0 = arith.constant 0 : i32
    %c0_i32_1 = arith.constant 0 : i32
    return %c0_i32, %c0_i32_0 : i32, i32
  }
  func.func @transform_11(%arg0: i32) -> (i32, i32) {
    %c0_i32 = arith.constant 0 : i32
    %c0_i32_0 = arith.constant 0 : i32
    return %c0_i32, %arg0 : i32, i32
  }
}

</mosaic_0001>

<llo_original>
// kernel: nn_cond_forward.1
$region0: #{nn_cond_forward.1}
  #allocation0 [shape = 'u32[]', space=smem, size = 0x4, offset = 0x4, fixed_abs, tag = 'smem constant byte address 0x4 - core index']
  #allocation1 [shape = 'u32[72,128]{1,0:T(1,128)}', space=vmem, size = 0x9000, scoped, tag = 'internal scratch']
  #allocation2 [shape = 'f32[1,1]{1,0:T(1,128)S(1)}', space=vmem, size = 0x200, scoped, tag = 'scoped memory for nn_cond_forward.1']
  %s0 = inlined_call_operand.vmem [shape: f32[3,8], index: 0, kind: input, shape index: {}]
  %s1 = inlined_call_operand.vmem [shape: f32[64,3], index: 1, kind: input, shape index: {}]
  %s2 = inlined_call_operand.vmem [shape: f32[64,1], index: 2, kind: input, shape index: {}]
  %s3 = inlined_call_operand.vmem [shape: bf16[64,64], index: 3, kind: input, shape index: {}]
  %s4 = inlined_call_operand.vmem [shape: f32[64,1], index: 4, kind: input, shape index: {}]
  %s5 = inlined_call_operand.vmem [shape: bf16[64,64], index: 5, kind: input, shape index: {}]
  %s6 = inlined_call_operand.vmem [shape: f32[64,1], index: 6, kind: input, shape index: {}]
  %s7 = inlined_call_operand.vmem [shape: bf16[64,64], index: 7, kind: input, shape index: {}]
  %s8 = inlined_call_operand.vmem [shape: f32[64,1], index: 8, kind: input, shape index: {}]
  %s9 = inlined_call_operand.vmem [shape: f32[64,1], index: 9, kind: input, shape index: {}]
  %s10 = inlined_call_operand.<no memory space> [shape: f32[1,1], index: 10, kind: input, shape index: {}]
  %s11 = inlined_call_operand.hbm [shape: f32[1,8], index: 11, kind: output, shape index: {}]
  %s12 = sld [smem:[#allocation0]]
  $region54: #{nn_cond_forward.1} parent=0
    _
  %s14 = ssub.s32 1, %s12
  %s15 = scalar_select 0, %s14, %s12
  %v16 = vstv %s10
  %17 = vst [vmem:[#allocation2] sm:$0x1] %v16
  $region1: #{nn_cond_forward.1} parent=0
    #allocation3 [shape = 'u8[512]{0}', space=vmem, size = 0x400, scoped, tag = 'output window, operand 0, single buffered']
    #allocation4 [shape = 's32[1]{0}', space=sflag, size = 0x4, scoped, tag = 'scoped memory for nn_cond_forward.1']
    %18 = vsyncpa [#allocation4], 0
    // Predicated region
    $region2: #{nn_cond_forward.1} parent=1 // pred_check
      _
    $region3: #{nn_cond_forward.1} parent=1 // pred_check_branch
      %20 = sbr.rel (0) target = $region5
    $region4: #{nn_cond_forward.1} parent=1 // pred_region
      _
    $region5: #{nn_cond_forward.1} parent=1 // pred_fallthru
      _
    // Predicated region
    $region6: #{nn_cond_forward.1} parent=1 // pred_check
      _
    $region7: #{nn_cond_forward.1} parent=1 // pred_check_branch
      %22 = sbr.rel (0) target = $region9
    $region8: #{nn_cond_forward.1} parent=1 // pred_region
      _
    $region9: #{nn_cond_forward.1} parent=1 // pred_fallthru
      _
    // Predicated region
    $region10: #{nn_cond_forward.1} parent=1 // pred_check
      _
    $region11: #{nn_cond_forward.1} parent=1 // pred_check_branch
      %24 = sbr.rel (0) target = $region13
    $region12: #{nn_cond_forward.1} parent=1 // pred_region
      _
    $region13: #{nn_cond_forward.1} parent=1 // pred_fallthru
      _
    // Predicated region
    $region14: #{nn_cond_forward.1} parent=1 // pred_check
      _
    $region15: #{nn_cond_forward.1} parent=1 // pred_check_branch
      %26 = sbr.rel (0) target = $region17
    $region16: #{nn_cond_forward.1} parent=1 // pred_region
      _
    $region17: #{nn_cond_forward.1} parent=1 // pred_fallthru
      _
    // Predicated region
    $region18: #{nn_cond_forward.1} parent=1 // pred_check
      _
    $region19: #{nn_cond_forward.1} parent=1 // pred_check_branch
      %28 = sbr.rel (0) target = $region21
    $region20: #{nn_cond_forward.1} parent=1 // pred_region
      _
    $region21: #{nn_cond_forward.1} parent=1 // pred_fallthru
      _
    // Predicated region
    $region22: #{nn_cond_forward.1} parent=1 // pred_check
      _
    $region23: #{nn_cond_forward.1} parent=1 // pred_check_branch
      %30 = sbr.rel (0) target = $region25
    $region24: #{nn_cond_forward.1} parent=1 // pred_region
      _
    $region25: #{nn_cond_forward.1} parent=1 // pred_fallthru
      _
    // Predicated region
    $region26: #{nn_cond_forward.1} parent=1 // pred_check
      _
    $region27: #{nn_cond_forward.1} parent=1 // pred_check_branch
      %32 = sbr.rel (0) target = $region29
    $region28: #{nn_cond_forward.1} parent=1 // pred_region
      _
    $region29: #{nn_cond_forward.1} parent=1 // pred_fallthru
      _
    // Predicated region
    $region30: #{nn_cond_forward.1} parent=1 // pred_check
      _
    $region31: #{nn_cond_forward.1} parent=1 // pred_check_branch
      %34 = sbr.rel (0) target = $region33
    $region32: #{nn_cond_forward.1} parent=1 // pred_region
      _
    $region33: #{nn_cond_forward.1} parent=1 // pred_fallthru
      _
    // Predicated region
    $region34: #{nn_cond_forward.1} parent=1 // pred_check
      _
    $region35: #{nn_cond_forward.1} parent=1 // pred_check_branch
      %36 = sbr.rel (0) target = $region37
    $region36: #{nn_cond_forward.1} parent=1 // pred_region
      _
    $region37: #{nn_cond_forward.1} parent=1 // pred_fallthru
      _
    // Predicated region
    $region38: #{nn_cond_forward.1} parent=1 // pred_check
      _
    $region39: #{nn_cond_forward.1} parent=1 // pred_check_branch
      %38 = sbr.rel (0) target = $region41
    $region40: #{nn_cond_forward.1} parent=1 // pred_region
      _
    $region41: #{nn_cond_forward.1} parent=1 // pred_fallthru
      _
    // Predicated region
    $region42: #{nn_cond_forward.1} parent=1 // pred_check
      _
    $region43: #{nn_cond_forward.1} parent=1 // pred_check_branch
      %40 = sbr.rel (0) target = $region45
    $region44: #{nn_cond_forward.1} parent=1 // pred_region
      _
    $region45: #{nn_cond_forward.1} parent=1 // pred_fallthru
      _
    %v42 = vld [vmem:[%s0] sm:$0x7]
    %v43 = vld [vmem:[%s1] sm:$0xff]
    %v44 = vld [vmem:[%s1 + $0x8] sm:$0xff]
    %v45 = vld [vmem:[%s1 + $0x10] sm:$0xff]
    %v46 = vld [vmem:[%s1 + $0x18] sm:$0xff]
    %v47 = vld [vmem:[%s1 + $0x20] sm:$0xff]
    %v48 = vld [vmem:[%s1 + $0x28] sm:$0xff]
    %v49 = vld [vmem:[%s1 + $0x30] sm:$0xff]
    %v50 = vld [vmem:[%s1 + $0x38] sm:$0xff]
    %52 = vset.pattern.permute.xlu0 0
    %53 = vperm.xlu0 %52, %v43
    %v54 = vpop.permute.xlu0 %53
    %57 = vset.pattern.permute.xlu0 0
    %58 = vperm.xlu0 %57, %v44
    %v59 = vpop.permute.xlu0 %58
    %62 = vset.pattern.permute.xlu0 0
    %63 = vperm.xlu0 %62, %v45
    %v64 = vpop.permute.xlu0 %63
    %67 = vset.pattern.permute.xlu0 0
    %68 = vperm.xlu0 %67, %v46
    %v69 = vpop.permute.xlu0 %68
    %72 = vset.pattern.permute.xlu0 0
    %73 = vperm.xlu0 %72, %v47
    %v74 = vpop.permute.xlu0 %73
    %77 = vset.pattern.permute.xlu0 0
    %78 = vperm.xlu0 %77, %v48
    %v79 = vpop.permute.xlu0 %78
    %82 = vset.pattern.permute.xlu0 0
    %83 = vperm.xlu0 %82, %v49
    %v84 = vpop.permute.xlu0 %83
    %87 = vset.pattern.permute.xlu0 0
    %88 = vperm.xlu0 %87, %v50
    %v89 = vpop.permute.xlu0 %88
    %v91 = vperm.slane %v42, 0
    %v92 = vmul.f32 %v54, %v91
    %v93 = vmul.f32 %v59, %v91
    %v94 = vmul.f32 %v64, %v91
    %v95 = vmul.f32 %v69, %v91
    %v96 = vmul.f32 %v74, %v91
    %v97 = vmul.f32 %v79, %v91
    %v98 = vmul.f32 %v84, %v91
    %v99 = vmul.f32 %v89, %v91
    %100 = vset.pattern.permute.xlu0 1
    %101 = vperm.xlu0 %100, %v43
    %v102 = vpop.permute.xlu0 %101
    %104 = vset.pattern.permute.xlu0 1
    %105 = vperm.xlu0 %104, %v44
    %v106 = vpop.permute.xlu0 %105
    %108 = vset.pattern.permute.xlu0 1
    %109 = vperm.xlu0 %108, %v45
    %v110 = vpop.permute.xlu0 %109
    %112 = vset.pattern.permute.xlu0 1
    %113 = vperm.xlu0 %112, %v46
    %v114 = vpop.permute.xlu0 %113
    %116 = vset.pattern.permute.xlu0 1
    %117 = vperm.xlu0 %116, %v47
    %v118 = vpop.permute.xlu0 %117
    %120 = vset.pattern.permute.xlu0 1
    %121 = vperm.xlu0 %120, %v48
    %v122 = vpop.permute.xlu0 %121
    %124 = vset.pattern.permute.xlu0 1
    %125 = vperm.xlu0 %124, %v49
    %v126 = vpop.permute.xlu0 %125
    %128 = vset.pattern.permute.xlu0 1
    %129 = vperm.xlu0 %128, %v50
    %v130 = vpop.permute.xlu0 %129
    %v132 = vperm.slane %v42, 1
    %v133 = vmul.f32 %v102, %v132
    %v134 = vmul.f32 %v106, %v132
    %v135 = vmul.f32 %v110, %v132
    %v136 = vmul.f32 %v114, %v132
    %v137 = vmul.f32 %v118, %v132
    %v138 = vmul.f32 %v122, %v132
    %v139 = vmul.f32 %v126, %v132
    %v140 = vmul.f32 %v130, %v132
    %v141 = vadd.f32 %v92, %v133
    %v142 = vadd.f32 %v93, %v134
    %v143 = vadd.f32 %v94, %v135
    %v144 = vadd.f32 %v95, %v136
    %v145 = vadd.f32 %v96, %v137
    %v146 = vadd.f32 %v97, %v138
    %v147 = vadd.f32 %v98, %v139
    %v148 = vadd.f32 %v99, %v140
    %149 = vset.pattern.permute.xlu0 2
    %150 = vperm.xlu0 %149, %v43
    %v151 = vpop.permute.xlu0 %150
    %153 = vset.pattern.permute.xlu0 2
    %154 = vperm.xlu0 %153, %v44
    %v155 = vpop.permute.xlu0 %154
    %157 = vset.pattern.permute.xlu0 2
    %158 = vperm.xlu0 %157, %v45
    %v159 = vpop.permute.xlu0 %158
    %161 = vset.pattern.permute.xlu0 2
    %162 = vperm.xlu0 %161, %v46
    %v163 = vpop.permute.xlu0 %162
    %165 = vset.pattern.permute.xlu0 2
    %166 = vperm.xlu0 %165, %v47
    %v167 = vpop.permute.xlu0 %166
    %169 = vset.pattern.permute.xlu0 2
    %170 = vperm.xlu0 %169, %v48
    %v171 = vpop.permute.xlu0 %170
    %173 = vset.pattern.permute.xlu0 2
    %174 = vperm.xlu0 %173, %v49
    %v175 = vpop.permute.xlu0 %174
    %177 = vset.pattern.permute.xlu0 2
    %178 = vperm.xlu0 %177, %v50
    %v179 = vpop.permute.xlu0 %178
    %v181 = vperm.slane %v42, 2
    %v182 = vmul.f32 %v151, %v181
    %v183 = vmul.f32 %v155, %v181
    %v184 = vmul.f32 %v159, %v181
    %v185 = vmul.f32 %v163, %v181
    %v186 = vmul.f32 %v167, %v181
    %v187 = vmul.f32 %v171, %v181
    %v188 = vmul.f32 %v175, %v181
    %v189 = vmul.f32 %v179, %v181
    %v190 = vadd.f32 %v141, %v182
    %v191 = vadd.f32 %v142, %v183
    %v192 = vadd.f32 %v143, %v184
    %v193 = vadd.f32 %v144, %v185
    %v194 = vadd.f32 %v145, %v186
    %v195 = vadd.f32 %v146, %v187
    %v196 = vadd.f32 %v147, %v188
    %v197 = vadd.f32 %v148, %v189
    %v198 = vld [vmem:[%s2] sm:$0xff]
    %v199 = vld [vmem:[%s2 + $0x8] sm:$0xff]
    %v200 = vld [vmem:[%s2 + $0x10] sm:$0xff]
    %v201 = vld [vmem:[%s2 + $0x18] sm:$0xff]
    %v202 = vld [vmem:[%s2 + $0x20] sm:$0xff]
    %v203 = vld [vmem:[%s2 + $0x28] sm:$0xff]
    %v204 = vld [vmem:[%s2 + $0x30] sm:$0xff]
    %v205 = vld [vmem:[%s2 + $0x38] sm:$0xff]
    %207 = vset.pattern.permute.xlu0 0
    %208 = vperm.xlu0 %207, %v198
    %v209 = vpop.permute.xlu0 %208
    %212 = vset.pattern.permute.xlu0 0
    %213 = vperm.xlu0 %212, %v199
    %v214 = vpop.permute.xlu0 %213
    %217 = vset.pattern.permute.xlu0 0
    %218 = vperm.xlu0 %217, %v200
    %v219 = vpop.permute.xlu0 %218
    %222 = vset.pattern.permute.xlu0 0
    %223 = vperm.xlu0 %222, %v201
    %v224 = vpop.permute.xlu0 %223
    %227 = vset.pattern.permute.xlu0 0
    %228 = vperm.xlu0 %227, %v202
    %v229 = vpop.permute.xlu0 %228
    %232 = vset.pattern.permute.xlu0 0
    %233 = vperm.xlu0 %232, %v203
    %v234 = vpop.permute.xlu0 %233
    %237 = vset.pattern.permute.xlu0 0
    %238 = vperm.xlu0 %237, %v204
    %v239 = vpop.permute.xlu0 %238
    %242 = vset.pattern.permute.xlu0 0
    %243 = vperm.xlu0 %242, %v205
    %v244 = vpop.permute.xlu0 %243
    %v246 = vadd.f32 %v190, %v209
    %v247 = vadd.f32 %v191, %v214
    %v248 = vadd.f32 %v192, %v219
    %v249 = vadd.f32 %v193, %v224
    %v250 = vadd.f32 %v194, %v229
    %v251 = vadd.f32 %v195, %v234
    %v252 = vadd.f32 %v196, %v239
    %v253 = vadd.f32 %v197, %v244
    %v254 = vmul.f32 %v246, 0.5
    %v255 = vmul.f32 %v247, 0.5
    %v256 = vmul.f32 %v248, 0.5
    %v257 = vmul.f32 %v249, 0.5
    %v258 = vmul.f32 %v250, 0.5
    %v259 = vmul.f32 %v251, 0.5
    %v260 = vmul.f32 %v252, 0.5
    %v261 = vmul.f32 %v253, 0.5
    %v262 = vtanh.pop %v254
    %v263 = vtanh.pop %v255
    %v264 = vtanh.pop %v256
    %v265 = vtanh.pop %v257
    %v266 = vtanh.pop %v258
    %v267 = vtanh.pop %v259
    %v268 = vtanh.pop %v260
    %v269 = vtanh.pop %v261
    %v270 = vadd.f32 %v262, 1.0
    %v271 = vadd.f32 %v263, 1.0
    %v272 = vadd.f32 %v264, 1.0
    %v273 = vadd.f32 %v265, 1.0
    %v274 = vadd.f32 %v266, 1.0
    %v275 = vadd.f32 %v267, 1.0
    %v276 = vadd.f32 %v268, 1.0
    %v277 = vadd.f32 %v269, 1.0
    %v278 = vmul.f32 %v254, %v270
    %v279 = vmul.f32 %v255, %v271
    %v280 = vmul.f32 %v256, %v272
    %v281 = vmul.f32 %v257, %v273
    %v282 = vmul.f32 %v258, %v274
    %v283 = vmul.f32 %v259, %v275
    %v284 = vmul.f32 %v260, %v276
    %v285 = vmul.f32 %v261, %v277
    %v286 = vld [vmem:[%s3] sm:$0xf]
    %v287 = vld [vmem:[%s3 + $0x4] sm:$0xf]
    %v288 = vld [vmem:[%s3 + $0x8] sm:$0xf]
    %v289 = vld [vmem:[%s3 + $0xc] sm:$0xf]
    %v290 = vld [vmem:[%s3 + $0x10] sm:$0xf]
    %v291 = vld [vmem:[%s3 + $0x14] sm:$0xf]
    %v292 = vld [vmem:[%s3 + $0x18] sm:$0xf]
    %v293 = vld [vmem:[%s3 + $0x1c] sm:$0xf]
    %v294 = vpack.c.bf16 %v279, %v278
    %v295 = vpack.c.bf16 %v281, %v280
    %v296 = vpack.c.bf16 %v283, %v282
    %v297 = vpack.c.bf16 %v285, %v284
    %v298 = vld [vmem:[%s4] sm:$0xff]
    %v299 = vld [vmem:[%s4 + $0x8] sm:$0xff]
    %v300 = vld [vmem:[%s4 + $0x10] sm:$0xff]
    %v301 = vld [vmem:[%s4 + $0x18] sm:$0xff]
    %v302 = vld [vmem:[%s4 + $0x20] sm:$0xff]
    %v303 = vld [vmem:[%s4 + $0x28] sm:$0xff]
    %v304 = vld [vmem:[%s4 + $0x30] sm:$0xff]
    %v305 = vld [vmem:[%s4 + $0x38] sm:$0xff]
    %307 = vset.pattern.permute.xlu0 0
    %308 = vperm.xlu0 %307, %v298
    %v309 = vpop.permute.xlu0 %308
    %312 = vset.pattern.permute.xlu0 0
    %313 = vperm.xlu0 %312, %v299
    %v314 = vpop.permute.xlu0 %313
    %317 = vset.pattern.permute.xlu0 0
    %318 = vperm.xlu0 %317, %v300
    %v319 = vpop.permute.xlu0 %318
    %322 = vset.pattern.permute.xlu0 0
    %323 = vperm.xlu0 %322, %v301
    %v324 = vpop.permute.xlu0 %323
    %327 = vset.pattern.permute.xlu0 0
    %328 = vperm.xlu0 %327, %v302
    %v329 = vpop.permute.xlu0 %328
    %332 = vset.pattern.permute.xlu0 0
    %333 = vperm.xlu0 %332, %v303
    %v334 = vpop.permute.xlu0 %333
    %337 = vset.pattern.permute.xlu0 0
    %338 = vperm.xlu0 %337, %v304
    %v339 = vpop.permute.xlu0 %338
    %342 = vset.pattern.permute.xlu0 0
    %343 = vperm.xlu0 %342, %v305
    %v344 = vpop.permute.xlu0 %343
    %v354 = vunpack.c.l.b16 %v286
    %v355 = vunpack.c.l.b16 %v287
    %v356 = vunpack.c.l.b16 %v288
    %v357 = vunpack.c.l.b16 %v289
    %v358 = vunpack.c.l.b16 %v290
    %v359 = vunpack.c.l.b16 %v291
    %v360 = vunpack.c.l.b16 %v292
    %v361 = vunpack.c.l.b16 %v293
    %v362 = vpack.c.b16 %v355, %v354
    %v363 = vpack.c.b16 %v357, %v356
    %v364 = vpack.c.b16 %v359, %v358
    %v365 = vpack.c.b16 %v361, %v360
    %vm366 = vcmask 523264
    %v368 = vsel %vm366, %v362, 0
    %v371 = vsel %vm366, %v363, 0
    %v374 = vsel %vm366, %v364, 0
    %v377 = vsel %vm366, %v365, 0
    %379 = vmatpush.bf16.msra.mxu0 0
    %380 = vmatpush.bf16.msra.mxu0 0
    %381 = vmatpush.bf16.msra.mxu0 0
    %382 = vmatpush.bf16.msra.mxu0 0
    %383 = vmatpush.bf16.msra.mxu0 %v297
    %384 = vmatpush.bf16.msra.mxu0 %v296
    %385 = vmatpush.bf16.msra.mxu0 %v295
    %386 = vmatpush.bf16.msra.mxu0 %v294
    %387 = vmatmul.bf16.gmra.mxu0 %v368
    %v388 = vpop.f32.mrf.mxu0
    %v389 = vadd.f32 %v309, %v388
    %v390 = vpop.f32.mrf.mxu0
    %v391 = vadd.f32 %v314, %v390
    %392 = vmatmul.bf16.gmra.mxu0 %v371
    %v393 = vpop.f32.mrf.mxu0
    %v394 = vadd.f32 %v319, %v393
    %v395 = vpop.f32.mrf.mxu0
    %v396 = vadd.f32 %v324, %v395
    %397 = vmatmul.bf16.gmra.mxu0 %v374
    %v398 = vpop.f32.mrf.mxu0
    %v399 = vadd.f32 %v329, %v398
    %v400 = vpop.f32.mrf.mxu0
    %v401 = vadd.f32 %v334, %v400
    %402 = vmatmul.bf16.gmra.mxu0 %v377
    %v403 = vpop.f32.mrf.mxu0
    %v404 = vadd.f32 %v339, %v403
    %v405 = vpop.f32.mrf.mxu0
    %v406 = vadd.f32 %v344, %v405
    %407 = vdwg.mxu0
    %v408 = vmul.f32 %v389, 0.5
    %v409 = vmul.f32 %v391, 0.5
    %v410 = vmul.f32 %v394, 0.5
    %v411 = vmul.f32 %v396, 0.5
    %v412 = vmul.f32 %v399, 0.5
    %v413 = vmul.f32 %v401, 0.5
    %v414 = vmul.f32 %v404, 0.5
    %v415 = vmul.f32 %v406, 0.5
    %v416 = vtanh.pop %v408
    %v417 = vtanh.pop %v409
    %v418 = vtanh.pop %v410
    %v419 = vtanh.pop %v411
    %v420 = vtanh.pop %v412
    %v421 = vtanh.pop %v413
    %v422 = vtanh.pop %v414
    %v423 = vtanh.pop %v415
    %v424 = vadd.f32 %v416, 1.0
    %v425 = vadd.f32 %v417, 1.0
    %v426 = vadd.f32 %v418, 1.0
    %v427 = vadd.f32 %v419, 1.0
    %v428 = vadd.f32 %v420, 1.0
    %v429 = vadd.f32 %v421, 1.0
    %v430 = vadd.f32 %v422, 1.0
    %v431 = vadd.f32 %v423, 1.0
    %v432 = vmul.f32 %v408, %v424
    %v433 = vmul.f32 %v409, %v425
    %v434 = vmul.f32 %v410, %v426
    %v435 = vmul.f32 %v411, %v427
    %v436 = vmul.f32 %v412, %v428
    %v437 = vmul.f32 %v413, %v429
    %v438 = vmul.f32 %v414, %v430
    %v439 = vmul.f32 %v415, %v431
    %v440 = vld [vmem:[%s5] sm:$0xf]
    %v441 = vld [vmem:[%s5 + $0x4] sm:$0xf]
    %v442 = vld [vmem:[%s5 + $0x8] sm:$0xf]
    %v443 = vld [vmem:[%s5 + $0xc] sm:$0xf]
    %v444 = vld [vmem:[%s5 + $0x10] sm:$0xf]
    %v445 = vld [vmem:[%s5 + $0x14] sm:$0xf]
    %v446 = vld [vmem:[%s5 + $0x18] sm:$0xf]
    %v447 = vld [vmem:[%s5 + $0x1c] sm:$0xf]
    %v448 = vpack.c.bf16 %v433, %v432
    %v449 = vpack.c.bf16 %v435, %v434
    %v450 = vpack.c.bf16 %v437, %v436
    %v451 = vpack.c.bf16 %v439, %v438
    %v452 = vld [vmem:[%s6] sm:$0xff]
    %v453 = vld [vmem:[%s6 + $0x8] sm:$0xff]
    %v454 = vld [vmem:[%s6 + $0x10] sm:$0xff]
    %v455 = vld [vmem:[%s6 + $0x18] sm:$0xff]
    %v456 = vld [vmem:[%s6 + $0x20] sm:$0xff]
    %v457 = vld [vmem:[%s6 + $0x28] sm:$0xff]
    %v458 = vld [vmem:[%s6 + $0x30] sm:$0xff]
    %v459 = vld [vmem:[%s6 + $0x38] sm:$0xff]
    %461 = vset.pattern.permute.xlu0 0
    %462 = vperm.xlu0 %461, %v452
    %v463 = vpop.permute.xlu0 %462
    %466 = vset.pattern.permute.xlu0 0
    %467 = vperm.xlu0 %466, %v453
    %v468 = vpop.permute.xlu0 %467
    %471 = vset.pattern.permute.xlu0 0
    %472 = vperm.xlu0 %471, %v454
    %v473 = vpop.permute.xlu0 %472
    %476 = vset.pattern.permute.xlu0 0
    %477 = vperm.xlu0 %476, %v455
    %v478 = vpop.permute.xlu0 %477
    %481 = vset.pattern.permute.xlu0 0
    %482 = vperm.xlu0 %481, %v456
    %v483 = vpop.permute.xlu0 %482
    %486 = vset.pattern.permute.xlu0 0
    %487 = vperm.xlu0 %486, %v457
    %v488 = vpop.permute.xlu0 %487
    %491 = vset.pattern.permute.xlu0 0
    %492 = vperm.xlu0 %491, %v458
    %v493 = vpop.permute.xlu0 %492
    %496 = vset.pattern.permute.xlu0 0
    %497 = vperm.xlu0 %496, %v459
    %v498 = vpop.permute.xlu0 %497
    %v508 = vunpack.c.l.b16 %v440
    %v509 = vunpack.c.l.b16 %v441
    %v510 = vunpack.c.l.b16 %v442
    %v511 = vunpack.c.l.b16 %v443
    %v512 = vunpack.c.l.b16 %v444
    %v513 = vunpack.c.l.b16 %v445
    %v514 = vunpack.c.l.b16 %v446
    %v515 = vunpack.c.l.b16 %v447
    %v516 = vpack.c.b16 %v509, %v508
    %v517 = vpack.c.b16 %v511, %v510
    %v518 = vpack.c.b16 %v513, %v512
    %v519 = vpack.c.b16 %v515, %v514
    %v521 = vsel %vm366, %v516, 0
    %v524 = vsel %vm366, %v517, 0
    %v527 = vsel %vm366, %v518, 0
    %v530 = vsel %vm366, %v519, 0
    %532 = vmatpush.bf16.msra.mxu0 0
    %533 = vmatpush.bf16.msra.mxu0 0
    %534 = vmatpush.bf16.msra.mxu0 0
    %535 = vmatpush.bf16.msra.mxu0 0
    %536 = vmatpush.bf16.msra.mxu0 %v451
    %537 = vmatpush.bf16.msra.mxu0 %v450
    %538 = vmatpush.bf16.msra.mxu0 %v449
    %539 = vmatpush.bf16.msra.mxu0 %v448
    %540 = vmatmul.bf16.gmra.mxu0 %v521
    %v541 = vpop.f32.mrf.mxu0
    %v542 = vadd.f32 %v463, %v541
    %v543 = vpop.f32.mrf.mxu0
    %v544 = vadd.f32 %v468, %v543
    %545 = vmatmul.bf16.gmra.mxu0 %v524
    %v546 = vpop.f32.mrf.mxu0
    %v547 = vadd.f32 %v473, %v546
    %v548 = vpop.f32.mrf.mxu0
    %v549 = vadd.f32 %v478, %v548
    %550 = vmatmul.bf16.gmra.mxu0 %v527
    %v551 = vpop.f32.mrf.mxu0
    %v552 = vadd.f32 %v483, %v551
    %v553 = vpop.f32.mrf.mxu0
    %v554 = vadd.f32 %v488, %v553
    %555 = vmatmul.bf16.gmra.mxu0 %v530
    %v556 = vpop.f32.mrf.mxu0
    %v557 = vadd.f32 %v493, %v556
    %v558 = vpop.f32.mrf.mxu0
    %v559 = vadd.f32 %v498, %v558
    %560 = vdwg.mxu0
    %v561 = vmul.f32 %v542, 0.5
    %v562 = vmul.f32 %v544, 0.5
    %v563 = vmul.f32 %v547, 0.5
    %v564 = vmul.f32 %v549, 0.5
    %v565 = vmul.f32 %v552, 0.5
    %v566 = vmul.f32 %v554, 0.5
    %v567 = vmul.f32 %v557, 0.5
    %v568 = vmul.f32 %v559, 0.5
    %v569 = vtanh.pop %v561
    %v570 = vtanh.pop %v562
    %v571 = vtanh.pop %v563
    %v572 = vtanh.pop %v564
    %v573 = vtanh.pop %v565
    %v574 = vtanh.pop %v566
    %v575 = vtanh.pop %v567
    %v576 = vtanh.pop %v568
    %v577 = vadd.f32 %v569, 1.0
    %v578 = vadd.f32 %v570, 1.0
    %v579 = vadd.f32 %v571, 1.0
    %v580 = vadd.f32 %v572, 1.0
    %v581 = vadd.f32 %v573, 1.0
    %v582 = vadd.f32 %v574, 1.0
    %v583 = vadd.f32 %v575, 1.0
    %v584 = vadd.f32 %v576, 1.0
    %v585 = vmul.f32 %v561, %v577
    %v586 = vmul.f32 %v562, %v578
    %v587 = vmul.f32 %v563, %v579
    %v588 = vmul.f32 %v564, %v580
    %v589 = vmul.f32 %v565, %v581
    %v590 = vmul.f32 %v566, %v582
    %v591 = vmul.f32 %v567, %v583
    %v592 = vmul.f32 %v568, %v584
    %v593 = vld [vmem:[%s7] sm:$0xf]
    %v594 = vld [vmem:[%s7 + $0x4] sm:$0xf]
    %v595 = vld [vmem:[%s7 + $0x8] sm:$0xf]
    %v596 = vld [vmem:[%s7 + $0xc] sm:$0xf]
    %v597 = vld [vmem:[%s7 + $0x10] sm:$0xf]
    %v598 = vld [vmem:[%s7 + $0x14] sm:$0xf]
    %v599 = vld [vmem:[%s7 + $0x18] sm:$0xf]
    %v600 = vld [vmem:[%s7 + $0x1c] sm:$0xf]
    %v601 = vpack.c.bf16 %v586, %v585
    %v602 = vpack.c.bf16 %v588, %v587
    %v603 = vpack.c.bf16 %v590, %v589
    %v604 = vpack.c.bf16 %v592, %v591
    %v605 = vld [vmem:[%s8] sm:$0xff]
    %v606 = vld [vmem:[%s8 + $0x8] sm:$0xff]
    %v607 = vld [vmem:[%s8 + $0x10] sm:$0xff]
    %v608 = vld [vmem:[%s8 + $0x18] sm:$0xff]
    %v609 = vld [vmem:[%s8 + $0x20] sm:$0xff]
    %v610 = vld [vmem:[%s8 + $0x28] sm:$0xff]
    %v611 = vld [vmem:[%s8 + $0x30] sm:$0xff]
    %v612 = vld [vmem:[%s8 + $0x38] sm:$0xff]
    %614 = vset.pattern.permute.xlu0 0
    %615 = vperm.xlu0 %614, %v605
    %v616 = vpop.permute.xlu0 %615
    %619 = vset.pattern.permute.xlu0 0
    %620 = vperm.xlu0 %619, %v606
    %v621 = vpop.permute.xlu0 %620
    %624 = vset.pattern.permute.xlu0 0
    %625 = vperm.xlu0 %624, %v607
    %v626 = vpop.permute.xlu0 %625
    %629 = vset.pattern.permute.xlu0 0
    %630 = vperm.xlu0 %629, %v608
    %v631 = vpop.permute.xlu0 %630
    %634 = vset.pattern.permute.xlu0 0
    %635 = vperm.xlu0 %634, %v609
    %v636 = vpop.permute.xlu0 %635
    %639 = vset.pattern.permute.xlu0 0
    %640 = vperm.xlu0 %639, %v610
    %v641 = vpop.permute.xlu0 %640
    %644 = vset.pattern.permute.xlu0 0
    %645 = vperm.xlu0 %644, %v611
    %v646 = vpop.permute.xlu0 %645
    %649 = vset.pattern.permute.xlu0 0
    %650 = vperm.xlu0 %649, %v612
    %v651 = vpop.permute.xlu0 %650
    %v661 = vunpack.c.l.b16 %v593
    %v662 = vunpack.c.l.b16 %v594
    %v663 = vunpack.c.l.b16 %v595
    %v664 = vunpack.c.l.b16 %v596
    %v665 = vunpack.c.l.b16 %v597
    %v666 = vunpack.c.l.b16 %v598
    %v667 = vunpack.c.l.b16 %v599
    %v668 = vunpack.c.l.b16 %v600
    %v669 = vpack.c.b16 %v662, %v661
    %v670 = vpack.c.b16 %v664, %v663
    %v671 = vpack.c.b16 %v666, %v665
    %v672 = vpack.c.b16 %v668, %v667
    %v674 = vsel %vm366, %v669, 0
    %v677 = vsel %vm366, %v670, 0
    %v680 = vsel %vm366, %v671, 0
    %v683 = vsel %vm366, %v672, 0
    %685 = vmatpush.bf16.msra.mxu0 0
    %686 = vmatpush.bf16.msra.mxu0 0
    %687 = vmatpush.bf16.msra.mxu0 0
    %688 = vmatpush.bf16.msra.mxu0 0
    %689 = vmatpush.bf16.msra.mxu0 %v604
    %690 = vmatpush.bf16.msra.mxu0 %v603
    %691 = vmatpush.bf16.msra.mxu0 %v602
    %692 = vmatpush.bf16.msra.mxu0 %v601
    %693 = vmatmul.bf16.gmra.mxu0 %v674
    %v694 = vpop.f32.mrf.mxu0
    %v695 = vadd.f32 %v616, %v694
    %v696 = vpop.f32.mrf.mxu0
    %v697 = vadd.f32 %v621, %v696
    %698 = vmatmul.bf16.gmra.mxu0 %v677
    %v699 = vpop.f32.mrf.mxu0
    %v700 = vadd.f32 %v626, %v699
    %v701 = vpop.f32.mrf.mxu0
    %v702 = vadd.f32 %v631, %v701
    %703 = vmatmul.bf16.gmra.mxu0 %v680
    %v704 = vpop.f32.mrf.mxu0
    %v705 = vadd.f32 %v636, %v704
    %v706 = vpop.f32.mrf.mxu0
    %v707 = vadd.f32 %v641, %v706
    %708 = vmatmul.bf16.gmra.mxu0 %v683
    %v709 = vpop.f32.mrf.mxu0
    %v710 = vadd.f32 %v646, %v709
    %v711 = vpop.f32.mrf.mxu0
    %v712 = vadd.f32 %v651, %v711
    %713 = vdwg.mxu0
    %v714 = vmul.f32 %v695, 0.5
    %v715 = vmul.f32 %v697, 0.5
    %v716 = vmul.f32 %v700, 0.5
    %v717 = vmul.f32 %v702, 0.5
    %v718 = vmul.f32 %v705, 0.5
    %v719 = vmul.f32 %v707, 0.5
    %v720 = vmul.f32 %v710, 0.5
    %v721 = vmul.f32 %v712, 0.5
    %v722 = vtanh.pop %v714
    %v723 = vtanh.pop %v715
    %v724 = vtanh.pop %v716
    %v725 = vtanh.pop %v717
    %v726 = vtanh.pop %v718
    %v727 = vtanh.pop %v719
    %v728 = vtanh.pop %v720
    %v729 = vtanh.pop %v721
    %v730 = vadd.f32 %v722, 1.0
    %v731 = vadd.f32 %v723, 1.0
    %v732 = vadd.f32 %v724, 1.0
    %v733 = vadd.f32 %v725, 1.0
    %v734 = vadd.f32 %v726, 1.0
    %v735 = vadd.f32 %v727, 1.0
    %v736 = vadd.f32 %v728, 1.0
    %v737 = vadd.f32 %v729, 1.0
    %v738 = vmul.f32 %v714, %v730
    %v739 = vmul.f32 %v715, %v731
    %v740 = vmul.f32 %v716, %v732
    %v741 = vmul.f32 %v717, %v733
    %v742 = vmul.f32 %v718, %v734
    %v743 = vmul.f32 %v719, %v735
    %v744 = vmul.f32 %v720, %v736
    %v745 = vmul.f32 %v721, %v737
    %v746 = vld [vmem:[%s9] sm:$0xff]
    %v747 = vld [vmem:[%s9 + $0x8] sm:$0xff]
    %v748 = vld [vmem:[%s9 + $0x10] sm:$0xff]
    %v749 = vld [vmem:[%s9 + $0x18] sm:$0xff]
    %v750 = vld [vmem:[%s9 + $0x20] sm:$0xff]
    %v751 = vld [vmem:[%s9 + $0x28] sm:$0xff]
    %v752 = vld [vmem:[%s9 + $0x30] sm:$0xff]
    %v753 = vld [vmem:[%s9 + $0x38] sm:$0xff]
    %755 = vset.pattern.permute.xlu0 0
    %756 = vperm.xlu0 %755, %v746
    %v757 = vpop.permute.xlu0 %756
    %760 = vset.pattern.permute.xlu0 0
    %761 = vperm.xlu0 %760, %v747
    %v762 = vpop.permute.xlu0 %761
    %765 = vset.pattern.permute.xlu0 0
    %766 = vperm.xlu0 %765, %v748
    %v767 = vpop.permute.xlu0 %766
    %770 = vset.pattern.permute.xlu0 0
    %771 = vperm.xlu0 %770, %v749
    %v772 = vpop.permute.xlu0 %771
    %775 = vset.pattern.permute.xlu0 0
    %776 = vperm.xlu0 %775, %v750
    %v777 = vpop.permute.xlu0 %776
    %780 = vset.pattern.permute.xlu0 0
    %781 = vperm.xlu0 %780, %v751
    %v782 = vpop.permute.xlu0 %781
    %785 = vset.pattern.permute.xlu0 0
    %786 = vperm.xlu0 %785, %v752
    %v787 = vpop.permute.xlu0 %786
    %790 = vset.pattern.permute.xlu0 0
    %791 = vperm.xlu0 %790, %v753
    %v792 = vpop.permute.xlu0 %791
    %v794 = vmul.f32 %v738, %v757
    %v795 = vmul.f32 %v739, %v762
    %v796 = vmul.f32 %v740, %v767
    %v797 = vmul.f32 %v741, %v772
    %v798 = vmul.f32 %v742, %v777
    %v799 = vmul.f32 %v743, %v782
    %v800 = vmul.f32 %v744, %v787
    %v801 = vmul.f32 %v745, %v792
    %vm802 = vcmask 64512
    %v803 = vsel %vm802, %v794, 0.0
    %v804 = vsel %vm802, %v795, 0.0
    %v805 = vadd.f32 %v803, %v804
    %v806 = vsel %vm802, %v796, 0.0
    %v807 = vadd.f32 %v805, %v806
    %v808 = vsel %vm802, %v797, 0.0
    %v809 = vadd.f32 %v807, %v808
    %v810 = vsel %vm802, %v798, 0.0
    %v811 = vadd.f32 %v809, %v810
    %v812 = vsel %vm802, %v799, 0.0
    %v813 = vadd.f32 %v811, %v812
    %v814 = vsel %vm802, %v800, 0.0
    %v815 = vadd.f32 %v813, %v814
    %v816 = vsel %vm802, %v801, 0.0
    %v817 = vadd.f32 %v815, %v816
    %v818 = vrot.slane %v817, 4
    %v819 = vadd.f32 %v817, %v818
    %v820 = vrot.slane %v819, 2
    %v821 = vadd.f32 %v819, %v820
    %v822 = vrot.slane %v821, 1
    %v823 = vadd.f32 %v821, %v822
    %v824 = vld [vmem:[#allocation2] sm:$0x1]
    %826 = vset.pattern.permute.xlu0 0
    %827 = vperm.xlu0 %826, %v824
    %v828 = vpop.permute.xlu0 %827
    %v830 = vperm.slane %v828, 0
    %v831 = vadd.f32 %v823, %v830
    %vm832 = vcmask 57344
    %833 = vst.msk [vmem:[#allocation3] sm:$0x1] %vm832, %v831
    // Predicated region
    $region46: #{nn_cond_forward.1} parent=1 // pred_check
      _
    $region47: #{nn_cond_forward.1} parent=1 // pred_check_branch
      %835 = sbr.rel (0) target = $region49
    $region48: #{nn_cond_forward.1} parent=1 // pred_region
      %837 = vsyncadd [#allocation4], 0
      %s839 = sshll.u32 [#allocation3], 4
      %s840 = int_to_ptr.vmem [resolvable:$true] %s839
      %s841 = sshll.u32 %s11, 4
      %s842 = int_to_ptr.hbm [resolvable:$true] %s841
      %844 = dma.vmem_to_hbm [thread:$0]  %s840, 16, %s842, [#allocation4]
    $region49: #{nn_cond_forward.1} parent=1 // pred_fallthru
      _
    // Predicated region
    $region50: #{nn_cond_forward.1} parent=1 // pred_check
      _
    $region51: #{nn_cond_forward.1} parent=1 // pred_check_branch
      %846 = sbr.rel (0) target = $region53
    $region52: #{nn_cond_forward.1} parent=1 // pred_region
      %848 = dma.done [#allocation4], 16
    $region53: #{nn_cond_forward.1} parent=1 // pred_fallthru
      _
    %849 = vsyncpa [#allocation4], 1

</llo_original>
